<compile_context>
chip_gen: v7x
topology: tpu7x:2x2x1
jax: 0.10.0
libtpu: 0.0.40
codegen_flags: <defaults>
</compile_context>

<pallas_src>
import math

import jax
import jax.numpy as jnp
from jax.experimental import pallas as pl
from jax.experimental.pallas import tpu as pltpu

_LANE = 128
_MIN_PALLAS_BYTES = 256 * 1024   # below this, jnp.transpose / fusion wins
_MAX_PACKED_R = 16               # packed path unrolls R small matmuls


def _floor_to(v, m):
    return (v // m) * m


def _vmem_limit_bytes():
    """Scoped-VMEM budget per generation.

    v5e/v6e have 128 MiB physical VMEM -> a 64 MiB scoped limit is safe and
    lets us use 1024x1024 f32 tiles.  v7x only has 64 MiB physical, so stay at
    32 MiB.  Unknown / query failure -> conservative 32 MiB.
    """
    try:
        cap = getattr(pltpu.get_tpu_info(), "vmem_capacity_bytes", None)
        if cap is not None and cap >= 100 * 1024 * 1024:
            return 64 * 1024 * 1024
    except Exception:
        pass
    return 32 * 1024 * 1024


def _plain_tile_caps(itemsize, vmem_limit):
    """Largest (r_cap, s_cap) whose double-buffered in+out footprint
    (4 tiles) stays at ~1/4 of the scoped VMEM limit (headroom for the
    transposed temporary and pipeline bookkeeping)."""
    max_tile_elems = max(_LANE * _LANE, vmem_limit // (16 * itemsize))
    s_cap = min(1024, max(_LANE, _floor_to(max_tile_elems // _LANE, _LANE)))
    r_cap = min(2048, max(_LANE, _floor_to(max_tile_elems // s_cap, _LANE)))
    return r_cap, s_cap


def _pick_tile(dim, cap):
    # Full extent when it fits (always layout-legal, no masked edge);
    # otherwise the cap itself (a multiple of 128) with a cdiv grid and a
    # masked edge block.  Never produces a block larger than the VMEM budget.
    return dim if dim <= cap else cap


# ---------------------------------------------------------------------------
# Plain batched tiled 2-D transpose: (B, R, S) -> (B, S, R).
# ---------------------------------------------------------------------------
def _transpose_tile_kernel(x_ref, o_ref):
    # x_ref: (t_r, t_s) tile, o_ref: (t_s, t_r) tile.  Batch dim is squeezed
    # away by the BlockSpecs, so this is a clean 2-D tile transpose.
    o_ref[...] = x_ref[...].T


def _batched_transpose_2d(x3):
    B, R, S = x3.shape
    itemsize = jnp.dtype(x3.dtype).itemsize
    vmem_limit = _vmem_limit_bytes()
    r_cap, s_cap = _plain_tile_caps(itemsize, vmem_limit)
    t_r = _pick_tile(R, r_cap)
    t_s = _pick_tile(S, s_cap)

    # Largest streaming axis first so the leading "parallel" axis that gets
    # sharded across TensorCores (v7x megacore) has a large extent.
    grid = (pl.cdiv(S, t_s), pl.cdiv(R, t_r), B)

    return pl.pallas_call(
        _transpose_tile_kernel,
        out_shape=jax.ShapeDtypeStruct((B, S, R), x3.dtype),
        grid_spec=pltpu.PrefetchScalarGridSpec(
            num_scalar_prefetch=0,
            grid=grid,
            in_specs=[
                pl.BlockSpec((pl.Squeezed(), t_r, t_s),
                             lambda sj, ri, b: (b, ri, sj)),
            ],
            out_specs=pl.BlockSpec((pl.Squeezed(), t_s, t_r),
                                   lambda sj, ri, b: (b, sj, ri)),
        ),
        compiler_params=pltpu.CompilerParams(
            dimension_semantics=("parallel", "parallel", "parallel"),
            vmem_limit_bytes=vmem_limit,
        ),
        cost_estimate=pl.CostEstimate(
            flops=0, transcendentals=0,
            bytes_accessed=2 * B * R * S * itemsize),
    )(x3)


# ---------------------------------------------------------------------------
# Packed (lane-dense store) transpose for a small output minor dim R < 128.
# Output is produced directly in the packed view (B, S/g, g*R) with g = 128/R;
# reshaping that back to (B, S, R) is metadata-only (row-major compatible).
# ---------------------------------------------------------------------------
def _packed_transpose_kernel(x_ref, o_ref):
    # x_ref: (R, t_p, g) slice of the (B, R, S//g, g) input view.
    # o_ref: (t_p, g*R) lane-dense slab with o[p, j*R + c] == x[c, p, j].
    R, t_p, g = x_ref.shape
    lanes = g * R
    # Lane interleave via an exact 0/1 permutation matmul (MXU; every output
    # element is exactly one input element * 1.0) instead of a minor-dim
    # reshape whose relayout lowering is not guaranteed on all toolchains.
    j_ids = jax.lax.broadcasted_iota(jnp.int32, (g, lanes), 0)
    q_ids = jax.lax.broadcasted_iota(jnp.int32, (g, lanes), 1)
    acc = jnp.zeros((t_p, lanes), jnp.float32)
    for c in range(R):  # R <= _MAX_PACKED_R; unrolled at trace time
        sel = (q_ids == j_ids * R + c).astype(x_ref.dtype)
        acc += jnp.dot(x_ref[c], sel, preferred_element_type=jnp.float32)
    o_ref[...] = acc.astype(o_ref.dtype)


def _packed_transpose_small_minor(x3):
    B, R, S = x3.shape
    g = _LANE // R
    P = S // g
    itemsize = jnp.dtype(x3.dtype).itemsize
    vmem_limit = _vmem_limit_bytes()

    # in tile (R, t_p, g) and out tile (t_p, 128) each hold 128*t_p elements;
    # with double-buffering keep the footprint well inside the scoped limit.
    t_p_cap = max(8, min(2048,
                         _floor_to(vmem_limit // (16 * itemsize * _LANE), 8)))
    t_p = P if P <= t_p_cap else t_p_cap
    grid = (pl.cdiv(P, t_p), B)

    x4 = x3.reshape(B, R, P, g)   # metadata-only row-major split of S

    out = pl.pallas_call(
        _packed_transpose_kernel,
        out_shape=jax.ShapeDtypeStruct((B, P, _LANE), x3.dtype),
        grid_spec=pltpu.PrefetchScalarGridSpec(
            num_scalar_prefetch=0,
            grid=grid,
            in_specs=[
                pl.BlockSpec((pl.Squeezed(), R, t_p, g),
                             lambda pj, b: (b, 0, pj, 0)),
            ],
            out_specs=pl.BlockSpec((pl.Squeezed(), t_p, _LANE),
                                   lambda pj, b: (b, pj, 0)),
        ),
        compiler_params=pltpu.CompilerParams(
            dimension_semantics=("parallel", "parallel"),
            vmem_limit_bytes=vmem_limit,
        ),
        cost_estimate=pl.CostEstimate(
            flops=2 * B * P * _LANE * _LANE,
            transcendentals=0,
            bytes_accessed=2 * B * R * S * itemsize),
    )(x4)
    return out.reshape(B, S, R)   # metadata-only


# ---------------------------------------------------------------------------
# Wrapper: the Permute(*args) module.
# ---------------------------------------------------------------------------
def _split_two_group(perm):
    """Detect <identity prefix> + <swap of two contiguous axis groups>.

    Returns (b, k) such that perm == (0..b-1, b+k..ndim-1, b..b+k-1),
    or None if the permutation does not have that form.
    """
    ndim = len(perm)
    b = 0
    while b < ndim and perm[b] == b:
        b += 1
    if b == ndim:
        return None  # identity
    tail = perm[b:]
    k = tail[0] - b
    if 0 < k < ndim - b:
        expected = tuple(range(b + k, ndim)) + tuple(range(b, b + k))
        if tail == expected:
            return b, k
    return None


def make_permute(*perm):
    """Pallas-backed equivalent of the PyTorch Permute(*perm) module."""
    perm = tuple(int(p) for p in perm)

    def permute(x):
        ndim = x.ndim
        assert len(perm) == ndim and sorted(perm) == list(range(ndim)), perm
        out_shape = tuple(x.shape[p] for p in perm)
        if perm == tuple(range(ndim)):
            return x

        split = _split_two_group(perm)
        if split is None:
            # TODO(synk): permutations that are not <identity prefix> + <swap
            # of two contiguous axis groups> (e.g. (0,2,1,3)) are not lowered
            # to a Pallas kernel; ss2d only uses (0,2,3,1) / (0,3,1,2).
            return jnp.transpose(x, perm)

        b, k = split
        batch = math.prod(x.shape[:b])
        r = math.prod(x.shape[b:b + k])
        s = math.prod(x.shape[b + k:])

        # Degenerate axis group: the permute is a pure (metadata) reshape.
        if r == 1 or s == 1:
            return x.reshape(out_shape)

        # Tiny inputs: pallas_call launch + a full HBM round trip dominates;
        # let XLA handle it (ideally fused into the neighbouring op).
        nbytes = x.size * jnp.dtype(x.dtype).itemsize
        if nbytes < _MIN_PALLAS_BYTES or (r < _LANE and s < _LANE):
            return jnp.transpose(x, perm)

        x3 = x.reshape(batch, r, s)          # metadata-only reshape

        use_packed = (
            r < _LANE and r <= _MAX_PACKED_R and _LANE % r == 0
            and s % (_LANE // r) == 0
            and jnp.issubdtype(x.dtype, jnp.floating)
        )
        if use_packed:
            try:
                y3 = _packed_transpose_small_minor(x3)
            except Exception:
                # Robustness: if the packed kernel fails to lower on some
                # toolchain, the plain kernel is always layout-legal.
                y3 = _batched_transpose_2d(x3)
        else:
            # TODO(synk): the symmetric packed *read* for a small input minor
            # dim (the Permute(0,3,1,2) direction) is not implemented; it uses
            # the plain kernel (contiguous HBM reads, lane-sparse VMEM tiles).
            y3 = _batched_transpose_2d(x3)

        return y3.reshape(out_shape)         # metadata-only reshape

    return permute


if __name__ == "__main__":
    key = jax.random.PRNGKey(0)

    perm_fwd = (0, 2, 3, 1)   # NCHW -> NHWC (canonical ss2d use)
    permute_fwd = make_permute(*perm_fwd)
    permute_inv = make_permute(0, 3, 1, 2)   # NHWC -> NCHW

    # 1) Canonical small example shape (8 KiB): routed to the jnp fallback.
    x = jax.random.normal(key, (2, 4, 16, 16), dtype=jnp.float32)
    y = jax.block_until_ready(permute_fwd(x))
    assert y.shape == (2, 16, 16, 4) and y.dtype == x.dtype
    assert jnp.array_equal(y, jnp.transpose(x, perm_fwd))
    assert jnp.array_equal(jax.block_until_ready(permute_inv(y)), x)

    # 2) C = 128: plain lane-dense tiled Pallas transpose path (both ways).
    x2 = jax.random.normal(key, (2, 128, 16, 16), dtype=jnp.float32)
    y2 = jax.block_until_ready(permute_fwd(x2))
    assert jnp.array_equal(y2, jnp.transpose(x2, perm_fwd))
    assert jnp.array_equal(jax.block_until_ready(permute_inv(y2)), x2)

    # 3) C = 4 with larger spatial extent: packed lane-dense-store Pallas path
    #    forward, plain kernel for the inverse round trip.
    x3 = jax.random.normal(key, (2, 4, 128, 128), dtype=jnp.float32)
    y3 = jax.block_until_ready(permute_fwd(x3))
    assert y3.shape == (2, 128, 128, 4)
    assert jnp.array_equal(y3, jnp.transpose(x3, perm_fwd))
    assert jnp.array_equal(jax.block_until_ready(permute_inv(y3)), x3)

    print("KERNEL_OK")
</pallas_src>

<mosaic_0001>
module attributes {stable_mosaic.version = 11 : i64} {
  func.func @_transpose_tile_kernel(%arg0: i32, %arg1: i32, %arg2: i32, %arg3: memref<1x128x256xf32, #tpu.memory_space<vmem>>, %arg4: memref<1x256x128xf32, #tpu.memory_space<vmem>>) attributes {dimension_semantics = [#tpu.dimension_semantics<parallel>, #tpu.dimension_semantics<parallel>, #tpu.dimension_semantics<parallel>], iteration_bounds = array<i64: 1, 1, 2>, scalar_prefetch = 0 : i64, scratch_operands = 0 : i64, tpu.core_type = #tpu.core_type<tc>, window_params = [{transform_indices = @transform_0, window_bounds = array<i64: 1, 128, 256>}, {transform_indices = @transform_1, window_bounds = array<i64: 1, 256, 128>}]} {
    %c0 = arith.constant 0 : index
    %c0_0 = arith.constant 0 : index
    %c0_1 = arith.constant 0 : index
    %0 = vector.load %arg3[%c0, %c0_0, %c0_1] : memref<1x128x256xf32, #tpu.memory_space<vmem>>, vector<1x128x256xf32>
    %1 = vector.shape_cast %0 : vector<1x128x256xf32> to vector<128x256xf32>
    %2 = tpu.transpose %1, [1, 0] : vector<128x256xf32> -> vector<256x128xf32>
    %c0_2 = arith.constant 0 : index
    %c0_3 = arith.constant 0 : index
    %c0_4 = arith.constant 0 : index
    %3 = vector.load %arg4[%c0_2, %c0_3, %c0_4] : memref<1x256x128xf32, #tpu.memory_space<vmem>>, vector<1x256x128xf32>
    %4 = vector.shape_cast %3 : vector<1x256x128xf32> to vector<256x128xf32>
    %5 = vector.shape_cast %2 : vector<256x128xf32> to vector<1x256x128xf32>
    tpu.vector_store %arg4[%c0_2, %c0_3, %c0_4], %5 {strides = array<i32>} : memref<1x256x128xf32, #tpu.memory_space<vmem>>, vector<1x256x128xf32>,
    return
  }
  func.func @transform_0(%arg0: i32, %arg1: i32, %arg2: i32) -> (i32, i32, i32) {
    %c0_i32 = arith.constant 0 : i32
    return %arg2, %arg1, %arg0 : i32, i32, i32
  }
  func.func @transform_1(%arg0: i32, %arg1: i32, %arg2: i32) -> (i32, i32, i32) {
    %c0_i32 = arith.constant 0 : i32
    return %arg2, %arg0, %arg1 : i32, i32, i32
  }
}

</mosaic_0001>

<llo_original>
// kernel: tpu_custom_call.1
$region0: #{tpu_custom_call.1}
  #allocation0 [shape = 'u32[]', space=smem, size = 0x4, offset = 0x4, fixed_abs, tag = 'smem constant byte address 0x4 - core index']
  #allocation1 [shape = 'u32[144,128]{1,0:T(1,128)}', space=vmem, size = 0x12000, scoped, tag = 'internal scratch']
  %s0 = inlined_call_operand.hbm [shape: f32[2,128,256], index: 0, kind: input, shape index: {}]
  %s1 = inlined_call_operand.hbm [shape: f32[2,256,128], index: 1, kind: output, shape index: {}]
  %s2 = sld [smem:[#allocation0]]
  $region41: #{tpu_custom_call.1} parent=0
    _
  %s4 = ssub.s32 1, %s2
  %s5 = scalar_select 0, %s4, %s2
  $region1: #{tpu_custom_call.1} parent=0
    #allocation2 [shape = 'u8[262144]{0}', space=vmem, size = 0x40000, scoped, tag = 'input window, operand 0']
    #allocation3 [shape = 's32[2]{0}', space=sflag, size = 0x8, scoped, tag = 'scoped memory for tpu_custom_call.1']
    #allocation4 [shape = 's32[2]{0}', space=sflag, size = 0x8, scoped, tag = 'scoped memory for tpu_custom_call.1']
    #allocation5 [shape = 'u8[262144]{0}', space=vmem, size = 0x40000, scoped, tag = 'output window, operand 0']
    %6 = vsyncpa [#allocation3], 0
    %s7 = scalar_lea.sflag [#allocation3], 1
    %8 = vsyncpa %s7, 0
    %9 = vsyncpa [#allocation4], 0
    %s10 = scalar_lea.sflag [#allocation4], 1
    %11 = vsyncpa %s10, 0
    loop: start=0, step=1, limit=4
    $region2: #{tpu_custom_call.1} parent=1 // loop_pre_header
      _
    $region3: #{tpu_custom_call.1} parent=1 // loop_header
      %s13 = sphi 0, %s17
      %p14 = scmp.ge.s32.totalorder %s13, 4
      %s20 = sphi 0, %s39
      %s21 = sphi 0, %s35
      %s22 = sphi 0, %s31
      %s23 = sphi 0, %s20
      %s24 = sphi 0, %s21
      %s25 = sphi 0, %s22
      %s26 = sphi 0, %s23
      %s27 = sphi 0, %s24
      %s28 = sphi 0, %s25
      %s46 = sphi 0, %s48
      %s49 = sphi 0, %s46
      %s50 = sphi 0, %s49
      %s66 = sphi 0, %s50
      %s76 = sphi 0, %s78
      %s79 = sphi 0, %s76
      %s80 = sphi 0, %s79
      %s96 = sphi 0, %s80
    $region4: #{tpu_custom_call.1} parent=1 // loop_header_branch
      %16 = sbr.rel (%p14) target = $region8
    $region5: #{tpu_custom_call.1} parent=1 // loop_body
      %s18 = ssub.s32 %s13, 1
      %s19 = ssub.s32 %s13, 2
      %s29 = sadd.s32 1, %s22
      %p30 = scmp.ge.s32.totalorder %s29, 2
      %s31 = scalar_select %p30, 0, %s29
      %s32 = sadd.s32 1, %s21
      %s33 = scalar_select %p30, %s32, %s21
      %p34 = scmp.ge.s32.totalorder %s33, 1
      %s35 = scalar_select %p34, 0, %s33
      %s36 = sadd.s32 1, %s20
      %s37 = scalar_select %p34, %s36, %s20
      %p38 = scmp.ge.s32.totalorder %s37, 1
      %s39 = scalar_select %p38, 0, %s37
      %s40 = ssub.s32 %s22, %s31
      %s41 = ssub.s32 %s21, %s35
      %s42 = sor.u32 %s40, %s41
      %s43 = ssub.s32 %s20, %s39
      %s44 = sor.u32 %s42, %s43
      %p45 = scmp.eq.s32.totalorder %s44, 0
      %s47 = sadd.s32 %s46, 1
      %s48 = scalar_select %p45, %s46, %s47
      %p51 = pneg %p45
      %p52 = scmp.eq.s32.totalorder %s13, 1
      %p53 = por %p51, %p52
      %p54 = scmp.ne.s32.totalorder %s46, %s49
      %p55 = scmp.eq.s32.totalorder %s13, 0
      %p56 = por %p54, %p55
      %p57 = scmp.ne.s32.totalorder %s46, %s49
      %p58 = scmp.eq.s32.totalorder %s18, 1
      %p59 = por %p57, %p58
      %p60 = scmp.ne.s32.totalorder %s49, %s50
      %p61 = scmp.eq.s32.totalorder %s18, 0
      %p62 = por %p60, %p61
      %p63 = scmp.ne.s32.totalorder %s49, %s50
      %p64 = scmp.eq.s32.totalorder %s19, 1
      %p65 = por %p63, %p64
      %p67 = scmp.ne.s32.totalorder %s50, %s66
      %p68 = scmp.eq.s32.totalorder %s19, 0
      %p69 = por %p67, %p68
      %s70 = ssub.s32 %s22, %s31
      %s71 = ssub.s32 %s20, %s39
      %s72 = sor.u32 %s70, %s71
      %s73 = ssub.s32 %s21, %s35
      %s74 = sor.u32 %s72, %s73
      %p75 = scmp.eq.s32.totalorder %s74, 0
      %s77 = sadd.s32 %s76, 1
      %s78 = scalar_select %p75, %s76, %s77
      %p81 = pneg %p75
      %p82 = scmp.eq.s32.totalorder %s13, 1
      %p83 = por %p81, %p82
      %p84 = scmp.ne.s32.totalorder %s76, %s79
      %p85 = scmp.eq.s32.totalorder %s13, 0
      %p86 = por %p84, %p85
      %p87 = scmp.ne.s32.totalorder %s76, %s79
      %p88 = scmp.eq.s32.totalorder %s18, 1
      %p89 = por %p87, %p88
      %p90 = scmp.ne.s32.totalorder %s79, %s80
      %p91 = scmp.eq.s32.totalorder %s18, 0
      %p92 = por %p90, %p91
      %p93 = scmp.ne.s32.totalorder %s79, %s80
      %p94 = scmp.eq.s32.totalorder %s19, 1
      %p95 = por %p93, %p94
      %p97 = scmp.ne.s32.totalorder %s80, %s96
      %p98 = scmp.eq.s32.totalorder %s19, 0
      %p99 = por %p97, %p98
      %p100 = scmp.le.s32.totalorder 1, %s13
      %p101 = scmp.lt.s32.totalorder %s13, 3
      %p102 = pnand %p100, %p101
      %p103 = pneg %p102
      // Predicated region
      $region9: #{tpu_custom_call.1} parent=5 // pred_check
        _
      $region10: #{tpu_custom_call.1} parent=5 // pred_check_branch
        %105 = sbr.rel (%p102) target = $region12
      $region11: #{tpu_custom_call.1} parent=5 // pred_region
        %s106 = ssub.s32 %s13, 1
      $region12: #{tpu_custom_call.1} parent=5 // pred_fallthru
        _
      %p107 = scmp.lt.s32.totalorder %s13, 2
      // Predicated region
      $region13: #{tpu_custom_call.1} parent=5 // pred_check
        %p108 = pneg %p107
      $region14: #{tpu_custom_call.1} parent=5 // pred_check_branch
        %110 = sbr.rel (%p108) target = $region16
      $region15: #{tpu_custom_call.1} parent=5 // pred_region
        // Predicated region
        $region17: #{tpu_custom_call.1} parent=15 // pred_check
          %p111 = pneg %p56
        $region18: #{tpu_custom_call.1} parent=15 // pred_check_branch
          %113 = sbr.rel (%p111) target = $region20
        $region19: #{tpu_custom_call.1} parent=15 // pred_region
          %s114 = sand.u32 %s46, 1
          %s115 = scalar_lea.sflag [#allocation3], %s114
          %s116 = sand.u32 %s46, 1
          %s117 = smul.addr %s116, 256
          %s118 = scalar_lea.vmem [#allocation2], %s117
          %s119 = smul.u32 16, %s21
          %s120 = smul.u32 2, %s20
          %s122 = ssub.s32 4096, 4096
          %123 = vsyncadd %s115, %s122
          %s124 = smul.addr %s119, 2
          %s125 = sadd.s32 %s120, %s124
          %s126 = smul.addr %s22, 32
          %s127 = sadd.s32 %s125, %s126
          %s128 = smul.addr %s127, 128
          %s129 = scalar_lea.hbm %s0, %s128
          %s130 = sshll.u32 %s118, 4
          %s131 = int_to_ptr.vmem [resolvable:$true] %s130
          %136 = dma.hbm_to_vmem [thread:$0]  %s129, 4096, %s131, %s115, 256, 256, 16
        $region20: #{tpu_custom_call.1} parent=15 // pred_fallthru
          _
      $region16: #{tpu_custom_call.1} parent=5 // pred_fallthru
        _
      %p137 = scmp.le.s32.totalorder 1, %s13
      %p138 = scmp.lt.s32.totalorder %s13, 3
      %p139 = pnand %p137, %p138
      %p140 = pneg %p139
      // Predicated region
      $region21: #{tpu_custom_call.1} parent=5 // pred_check
        _
      $region22: #{tpu_custom_call.1} parent=5 // pred_check_branch
        %142 = sbr.rel (%p139) target = $region24
      $region23: #{tpu_custom_call.1} parent=5 // pred_region
        %s143 = ssub.s32 %s13, 1
        %s144 = sand.u32 %s49, 1
        %s145 = scalar_lea.sflag [#allocation3], %s144
        %s146 = sand.u32 %s49, 1
        %s147 = smul.addr %s146, 256
        %s148 = scalar_lea.vmem [#allocation2], %s147
        // Predicated region
        $region25: #{tpu_custom_call.1} parent=23 // pred_check
          %p149 = pneg %p62
        $region26: #{tpu_custom_call.1} parent=23 // pred_check_branch
          %151 = sbr.rel (%p149) target = $region28
        $region27: #{tpu_custom_call.1} parent=23 // pred_region
          %152 = dma.done %s145, 4096
        $region28: #{tpu_custom_call.1} parent=23 // pred_fallthru
          _
        %s153 = sand.u32 %s49, 1
        %s154 = scalar_lea.sflag [#allocation3], %s153
        %s155 = sand.u32 %s49, 1
        %s156 = smul.addr %s155, 256
        %s157 = scalar_lea.vmem [#allocation2], %s156
        %p158 = pneg %p62
        %p159 = pneg %p59
        %p160 = pneg %p92
        %p161 = pneg %p89
        %s162 = sand.u32 %s79, 1
        %s163 = scalar_lea.sflag [#allocation4], %s162
        %s164 = sand.u32 %s79, 1
        %s165 = smul.addr %s164, 256
        %s166 = scalar_lea.vmem [#allocation5], %s165
        %s167 = smul.u32 16, %s24
        %s168 = smul.u32 2, %s23
        %s169 = smul.u32 32, %s23
        %v170 = vld [vmem:[%s148] sm:$0xff]
        %v171 = vld [vmem:[%s148 + $0x8] sm:$0xff]
        %v172 = vld [vmem:[%s148 + $0x10] sm:$0xff]
        %v173 = vld [vmem:[%s148 + $0x18] sm:$0xff]
        %v174 = vld [vmem:[%s148 + $0x20] sm:$0xff]
        %v175 = vld [vmem:[%s148 + $0x28] sm:$0xff]
        %v176 = vld [vmem:[%s148 + $0x30] sm:$0xff]
        %v177 = vld [vmem:[%s148 + $0x38] sm:$0xff]
        %v178 = vld [vmem:[%s148 + $0x40] sm:$0xff]
        %v179 = vld [vmem:[%s148 + $0x48] sm:$0xff]
        %v180 = vld [vmem:[%s148 + $0x50] sm:$0xff]
        %v181 = vld [vmem:[%s148 + $0x58] sm:$0xff]
        %v182 = vld [vmem:[%s148 + $0x60] sm:$0xff]
        %v183 = vld [vmem:[%s148 + $0x68] sm:$0xff]
        %v184 = vld [vmem:[%s148 + $0x70] sm:$0xff]
        %v185 = vld [vmem:[%s148 + $0x78] sm:$0xff]
        %v186 = vld [vmem:[%s148 + $0x80] sm:$0xff]
        %v187 = vld [vmem:[%s148 + $0x88] sm:$0xff]
        %v188 = vld [vmem:[%s148 + $0x90] sm:$0xff]
        %v189 = vld [vmem:[%s148 + $0x98] sm:$0xff]
        %v190 = vld [vmem:[%s148 + $0xa0] sm:$0xff]
        %v191 = vld [vmem:[%s148 + $0xa8] sm:$0xff]
        %v192 = vld [vmem:[%s148 + $0xb0] sm:$0xff]
        %v193 = vld [vmem:[%s148 + $0xb8] sm:$0xff]
        %v194 = vld [vmem:[%s148 + $0xc0] sm:$0xff]
        %v195 = vld [vmem:[%s148 + $0xc8] sm:$0xff]
        %v196 = vld [vmem:[%s148 + $0xd0] sm:$0xff]
        %v197 = vld [vmem:[%s148 + $0xd8] sm:$0xff]
        %v198 = vld [vmem:[%s148 + $0xe0] sm:$0xff]
        %v199 = vld [vmem:[%s148 + $0xe8] sm:$0xff]
        %v200 = vld [vmem:[%s148 + $0xf0] sm:$0xff]
        %v201 = vld [vmem:[%s148 + $0xf8] sm:$0xff]
        %202 = vxpose.xlu0.b32.start [1/16] %v170, 128
        %203 = vxpose.xlu0.b32.cont [2/16] %v172, 128
        %204 = vxpose.xlu0.b32.cont [3/16] %v174, 128
        %205 = vxpose.xlu0.b32.cont [4/16] %v176, 128
        %206 = vxpose.xlu0.b32.cont [5/16] %v178, 128
        %207 = vxpose.xlu0.b32.cont [6/16] %v180, 128
        %208 = vxpose.xlu0.b32.cont [7/16] %v182, 128
        %209 = vxpose.xlu0.b32.cont [8/16] %v184, 128
        %210 = vxpose.xlu0.b32.cont [9/16] %v186, 128
        %211 = vxpose.xlu0.b32.cont [10/16] %v188, 128
        %212 = vxpose.xlu0.b32.cont [11/16] %v190, 128
        %213 = vxpose.xlu0.b32.cont [12/16] %v192, 128
        %214 = vxpose.xlu0.b32.cont [13/16] %v194, 128
        %215 = vxpose.xlu0.b32.cont [14/16] %v196, 128
        %216 = vxpose.xlu0.b32.cont [15/16] %v198, 128
        %217 = vxpose.xlu0.b32.end [16/16] %v200, 128
        %v218 = vpop.trf.xlu0
        %v219 = vpop.trf.xlu0
        %v220 = vpop.trf.xlu0
        %v221 = vpop.trf.xlu0
        %v222 = vpop.trf.xlu0
        %v223 = vpop.trf.xlu0
        %v224 = vpop.trf.xlu0
        %v225 = vpop.trf.xlu0
        %v226 = vpop.trf.xlu0
        %v227 = vpop.trf.xlu0
        %v228 = vpop.trf.xlu0
        %v229 = vpop.trf.xlu0
        %v230 = vpop.trf.xlu0
        %v231 = vpop.trf.xlu0
        %v232 = vpop.trf.xlu0
        %v233 = vpop.trf.xlu0
        %234 = vxpose.xlu0.b32.start [1/16] %v171, 128
        %235 = vxpose.xlu0.b32.cont [2/16] %v173, 128
        %236 = vxpose.xlu0.b32.cont [3/16] %v175, 128
        %237 = vxpose.xlu0.b32.cont [4/16] %v177, 128
        %238 = vxpose.xlu0.b32.cont [5/16] %v179, 128
        %239 = vxpose.xlu0.b32.cont [6/16] %v181, 128
        %240 = vxpose.xlu0.b32.cont [7/16] %v183, 128
        %241 = vxpose.xlu0.b32.cont [8/16] %v185, 128
        %242 = vxpose.xlu0.b32.cont [9/16] %v187, 128
        %243 = vxpose.xlu0.b32.cont [10/16] %v189, 128
        %244 = vxpose.xlu0.b32.cont [11/16] %v191, 128
        %245 = vxpose.xlu0.b32.cont [12/16] %v193, 128
        %246 = vxpose.xlu0.b32.cont [13/16] %v195, 128
        %247 = vxpose.xlu0.b32.cont [14/16] %v197, 128
        %248 = vxpose.xlu0.b32.cont [15/16] %v199, 128
        %249 = vxpose.xlu0.b32.end [16/16] %v201, 128
        %v250 = vpop.trf.xlu0
        %v251 = vpop.trf.xlu0
        %v252 = vpop.trf.xlu0
        %v253 = vpop.trf.xlu0
        %v254 = vpop.trf.xlu0
        %v255 = vpop.trf.xlu0
        %v256 = vpop.trf.xlu0
        %v257 = vpop.trf.xlu0
        %v258 = vpop.trf.xlu0
        %v259 = vpop.trf.xlu0
        %v260 = vpop.trf.xlu0
        %v261 = vpop.trf.xlu0
        %v262 = vpop.trf.xlu0
        %v263 = vpop.trf.xlu0
        %v264 = vpop.trf.xlu0
        %v265 = vpop.trf.xlu0
        %266 = vst [vmem:[%s166] sm:$0xff] %v218
        %267 = vst [vmem:[%s166 + $0x8] sm:$0xff] %v219
        %268 = vst [vmem:[%s166 + $0x10] sm:$0xff] %v220
        %269 = vst [vmem:[%s166 + $0x18] sm:$0xff] %v221
        %270 = vst [vmem:[%s166 + $0x20] sm:$0xff] %v222
        %271 = vst [vmem:[%s166 + $0x28] sm:$0xff] %v223
        %272 = vst [vmem:[%s166 + $0x30] sm:$0xff] %v224
        %273 = vst [vmem:[%s166 + $0x38] sm:$0xff] %v225
        %274 = vst [vmem:[%s166 + $0x40] sm:$0xff] %v226
        %275 = vst [vmem:[%s166 + $0x48] sm:$0xff] %v227
        %276 = vst [vmem:[%s166 + $0x50] sm:$0xff] %v228
        %277 = vst [vmem:[%s166 + $0x58] sm:$0xff] %v229
        %278 = vst [vmem:[%s166 + $0x60] sm:$0xff] %v230
        %279 = vst [vmem:[%s166 + $0x68] sm:$0xff] %v231
        %280 = vst [vmem:[%s166 + $0x70] sm:$0xff] %v232
        %281 = vst [vmem:[%s166 + $0x78] sm:$0xff] %v233
        %282 = vst [vmem:[%s166 + $0x80] sm:$0xff] %v250
        %283 = vst [vmem:[%s166 + $0x88] sm:$0xff] %v251
        %284 = vst [vmem:[%s166 + $0x90] sm:$0xff] %v252
        %285 = vst [vmem:[%s166 + $0x98] sm:$0xff] %v253
        %286 = vst [vmem:[%s166 + $0xa0] sm:$0xff] %v254
        %287 = vst [vmem:[%s166 + $0xa8] sm:$0xff] %v255
        %288 = vst [vmem:[%s166 + $0xb0] sm:$0xff] %v256
        %289 = vst [vmem:[%s166 + $0xb8] sm:$0xff] %v257
        %290 = vst [vmem:[%s166 + $0xc0] sm:$0xff] %v258
        %291 = vst [vmem:[%s166 + $0xc8] sm:$0xff] %v259
        %292 = vst [vmem:[%s166 + $0xd0] sm:$0xff] %v260
        %293 = vst [vmem:[%s166 + $0xd8] sm:$0xff] %v261
        %294 = vst [vmem:[%s166 + $0xe0] sm:$0xff] %v262
        %295 = vst [vmem:[%s166 + $0xe8] sm:$0xff] %v263
        %296 = vst [vmem:[%s166 + $0xf0] sm:$0xff] %v264
        %297 = vst [vmem:[%s166 + $0xf8] sm:$0xff] %v265
        %s298 = sand.u32 %s79, 1
        %s299 = scalar_lea.sflag [#allocation4], %s298
        %s300 = sand.u32 %s79, 1
        %s301 = smul.addr %s300, 256
        %s302 = scalar_lea.vmem [#allocation5], %s301
        // Predicated region
        $region29: #{tpu_custom_call.1} parent=23 // pred_check
          %p303 = pneg %p89
        $region30: #{tpu_custom_call.1} parent=23 // pred_check_branch
          %305 = sbr.rel (%p303) target = $region32
        $region31: #{tpu_custom_call.1} parent=23 // pred_region
          %s306 = smul.u32 32, %s23
          %s308 = ssub.s32 4096, 4096
          %309 = vsyncadd %s299, %s308
          %s310 = sadd.s32 %s24, %s306
          %s311 = smul.addr %s25, 32
          %s312 = sadd.s32 %s310, %s311
          %s313 = smul.addr %s312, 128
          %s314 = scalar_lea.hbm %s1, %s313
          %s315 = sshll.u32 %s302, 4
          %s316 = int_to_ptr.vmem [resolvable:$true] %s315
          %321 = dma.vmem_to_hbm [thread:$0]  %s316, 4096, %s314, %s299, 128, 128, 8
        $region32: #{tpu_custom_call.1} parent=23 // pred_fallthru
          _
      $region24: #{tpu_custom_call.1} parent=5 // pred_fallthru
        _
      %p322 = scmp.le.s32.totalorder 2, %s13
      // Predicated region
      $region33: #{tpu_custom_call.1} parent=5 // pred_check
        %p323 = pneg %p322
      $region34: #{tpu_custom_call.1} parent=5 // pred_check_branch
        %325 = sbr.rel (%p323) target = $region36
      $region35: #{tpu_custom_call.1} parent=5 // pred_region
        %s326 = ssub.s32 %s13, 2
        // Predicated region
        $region37: #{tpu_custom_call.1} parent=35 // pred_check
          %p327 = pneg %p95
        $region38: #{tpu_custom_call.1} parent=35 // pred_check_branch
          %329 = sbr.rel (%p327) target = $region40
        $region39: #{tpu_custom_call.1} parent=35 // pred_region
          %s330 = sand.u32 %s80, 1
          %s331 = scalar_lea.sflag [#allocation4], %s330
          %s332 = sand.u32 %s80, 1
          %s333 = smul.addr %s332, 256
          %s334 = scalar_lea.vmem [#allocation5], %s333
          %335 = dma.done %s331, 4096
        $region40: #{tpu_custom_call.1} parent=35 // pred_fallthru
          _
      $region36: #{tpu_custom_call.1} parent=5 // pred_fallthru
        _
    $region6: #{tpu_custom_call.1} parent=1 // loop_footer
      %s17 = sadd.s32 1, %s13
    $region7: #{tpu_custom_call.1} parent=1 // loop_footer_branch
      %12 = sbr.rel target = $region3
    $region8: #{tpu_custom_call.1} parent=1 // loop_exit
      _
    %336 = vsyncpa [#allocation3], 1
    %s337 = scalar_lea.sflag [#allocation3], 1
    %338 = vsyncpa %s337, 1
    %339 = vsyncpa [#allocation4], 1
    %s340 = scalar_lea.sflag [#allocation4], 1
    %341 = vsyncpa %s340, 1

</llo_original>
